<compile_context>
chip_gen: v5e
topology: v5e:2x2
jax: 0.10.0
libtpu: 0.0.40
codegen_flags: <defaults>
</compile_context>

<pallas_src>
import functools

import jax
import jax.numpy as jnp
from jax.experimental import pallas as pl
from jax.experimental.pallas import tpu as pltpu


def _se_kernel(x_ref, w1t_ref, w2t_ref, o_ref, acc_ref, *,
               hw, inv_hw, ts, ragged, unroll):
    # x_ref : (1, C, ts)     w1t_ref: (C, ratio)    w2t_ref: (ratio, C)
    # o_ref : (1, 1, C)      acc_ref: (C, 128) f32 scratch, persists across the k axis
    k = pl.program_id(1)

    @pl.when(k == 0)
    def _init():
        acc_ref[...] = jnp.zeros_like(acc_ref)

    base = k * ts                 # global spatial offset of this tile
    n_groups = ts // 128

    def body(g, carry):
        start = pl.multiple_of(g * 128, 128)
        xg = x_ref[0, :, pl.ds(start, 128)].astype(jnp.float32)     # (C, 128)
        if ragged:
            # Zero lanes whose global spatial index is past H*W (edge-block garbage).
            lane = jax.lax.broadcasted_iota(jnp.int32, (1, 128), 1)
            xg = jnp.where(base + start + lane < hw, xg, 0.0)
        acc_ref[...] += xg        # ref-accumulation: constant vreg pressure
        return carry

    jax.lax.fori_loop(0, n_groups, body, 0, unroll=unroll)

    @pl.when(k == pl.num_programs(1) - 1)
    def _finalize():
        # Lane reduce + sublane->lane relayout + mean scale in one tiny MXU matvec:
        # (1,128) filled with 1/(H*W), contracted with acc (C,128) over lanes -> (1, C).
        ones = jnp.full((1, 128), inv_hw, dtype=jnp.float32)
        y = jax.lax.dot_general(ones, acc_ref[...],
                                dimension_numbers=(((1,), (1,)), ((), ())),
                                preferred_element_type=jnp.float32)          # (1, C)
        # fc: Linear(C->ratio) -> ReLU -> Linear(ratio->C) -> Sigmoid, row form with
        # pre-transposed weights (y @ W1.T @ ... exactly as in PyTorch).
        h = jnp.maximum(
            jnp.dot(y, w1t_ref[...].astype(jnp.float32),
                    preferred_element_type=jnp.float32), 0.0)                # (1, ratio)
        z = jnp.dot(h, w2t_ref[...].astype(jnp.float32),
                    preferred_element_type=jnp.float32)                      # (1, C)
        o_ref[0] = jax.nn.sigmoid(z).astype(o_ref.dtype)                     # lane-dense row


def _vmem_capacity_bytes(default=64 << 20):
    """Best-effort physical VMEM query; conservative (v7x per-TC) fallback."""
    try:
        info = pltpu.get_tpu_info()
        cap = getattr(info, "vmem_capacity_bytes", None)
        if cap:
            return int(cap)
    except Exception:
        pass
    return default


def se_forward(x, w1, w2, *, spatial_tile=None, max_tile_bytes=None):
    """x: (B, C, H, W) NCHW. w1: (ratio, C) PyTorch Linear weight. w2: (C, ratio)."""
    B, C, H, W = x.shape
    ratio = w1.shape[0]
    assert w1.shape == (ratio, C) and w2.shape == (C, ratio)

    hw = H * W
    x_flat = x.reshape(B, C, hw)
    itemsize = jnp.dtype(x.dtype).itemsize

    # Only sub-128 spatial extents get padded (the tensor is tiny there); everything
    # else is handled raggedly in-kernel with no extra HBM traffic.
    if hw < 128:
        x_flat = jnp.pad(x_flat, ((0, 0), (0, 0), (0, 128 - hw)))
    hw_idx = x_flat.shape[-1]                       # spatial extent seen by BlockSpec

    # --- VMEM budgeting / tile sizing --------------------------------------------------
    vmem_cap = _vmem_capacity_bytes()
    w_bytes = (w1.size * jnp.dtype(w1.dtype).itemsize
               + w2.size * jnp.dtype(w2.dtype).itemsize)
    fixed_bytes = C * 128 * 4 + 2 * w_bytes + 2 * C * itemsize + (1 << 20)  # acc+w+out+slack

    if spatial_tile is None:
        if max_tile_bytes is None:
            # Two pipeline buffers for x must fit in ~half the physical VMEM.
            budget = max(2 << 20, vmem_cap // 2 - fixed_bytes)
            max_tile_bytes = min(16 << 20, budget // 2)
        max_lanes = max(128, (max_tile_bytes // max(1, C * itemsize)) // 128 * 128)
        ts = int(min(max_lanes, (hw_idx // 128) * 128))
    else:
        assert spatial_tile % 128 == 0, "spatial tile must be a multiple of 128 lanes"
        ts = int(min(spatial_tile, (hw_idx // 128) * 128))
    ts = max(ts, 128)

    n_sp = pl.cdiv(hw_idx, ts)
    ragged = (hw_idx % ts) != 0

    vmem_needed = 2 * C * ts * itemsize + fixed_bytes
    vmem_limit = int(min(max(32 << 20, vmem_needed + (4 << 20)), vmem_cap))

    kernel = functools.partial(
        _se_kernel, hw=hw, inv_hw=1.0 / float(hw), ts=ts, ragged=ragged,
        unroll=int(min(8, max(1, ts // 128))))

    out = pl.pallas_call(
        kernel,
        out_shape=jax.ShapeDtypeStruct((B, 1, C), x.dtype),
        grid_spec=pltpu.PrefetchScalarGridSpec(
            num_scalar_prefetch=0,
            grid=(B, n_sp),
            in_specs=[
                pl.BlockSpec((1, C, ts), lambda b, k: (b, 0, k)),
                pl.BlockSpec((C, ratio), lambda b, k: (0, 0)),   # VMEM-resident weights
                pl.BlockSpec((ratio, C), lambda b, k: (0, 0)),
            ],
            out_specs=pl.BlockSpec((1, 1, C), lambda b, k: (b, 0, 0)),
            scratch_shapes=[pltpu.VMEM((C, 128), jnp.float32)],
        ),
        compiler_params=pltpu.CompilerParams(
            dimension_semantics=("parallel", "arbitrary"),
            vmem_limit_bytes=vmem_limit),
        cost_estimate=pl.CostEstimate(
            flops=int(B * C * hw + 4 * B * C * ratio),
            transcendentals=int(B * C),
            bytes_accessed=int(x_flat.size * itemsize + 2 * w_bytes + B * C * itemsize),
        ),
    )(x_flat, jnp.transpose(w1), jnp.transpose(w2))

    return out.reshape(B, C, 1, 1)


def reference_se(x, w1, w2):
    """Pure-JAX reference mirroring the PyTorch module."""
    B, C = x.shape[:2]
    y = jnp.mean(x.astype(jnp.float32), axis=(2, 3))                    # (B, C)
    h = jnp.maximum(y @ w1.astype(jnp.float32).T, 0.0)                  # (B, ratio)
    z = jax.nn.sigmoid(h @ w2.astype(jnp.float32).T)                    # (B, C)
    return z.astype(x.dtype).reshape(B, C, 1, 1)


if __name__ == "__main__":
    key = jax.random.PRNGKey(0)
    k_x, k_w1, k_w2, k_x2, k_x3 = jax.random.split(key, 5)

    B, C, ratio = 2, 32, 16

    x = jax.random.normal(k_x, (B, C, 16, 16), dtype=jnp.float32)
    # Deterministic synthetic weights (PyTorch Linear weight shape = (out, in)).
    w1 = jax.random.normal(k_w1, (ratio, C), dtype=jnp.float32) * (1.0 / jnp.sqrt(C))
    w2 = jax.random.normal(k_w2, (C, ratio), dtype=jnp.float32) * (1.0 / jnp.sqrt(ratio))

    ref = reference_se(x, w1, w2)

    # 1) Default tiling (single spatial tile at this size).
    out = jax.block_until_ready(se_forward(x, w1, w2))
    assert out.shape == (B, C, 1, 1), out.shape
    assert jnp.allclose(out, ref, atol=1e-5, rtol=1e-5), "mismatch (default tile)"

    # 2) Forced small tile -> grid=(B, 2): exercises the pipelined multi-step
    #    accumulation and the pl.when init/finalize path.
    out2 = jax.block_until_ready(se_forward(x, w1, w2, spatial_tile=128))
    assert jnp.allclose(out2, ref, atol=1e-5, rtol=1e-5), "mismatch (multi-tile)"

    # 3) Ragged spatial extent (H*W = 144): in-kernel lane masking of the tail tile.
    x3 = jax.random.normal(k_x2, (B, C, 12, 12), dtype=jnp.float32)
    out3 = jax.block_until_ready(se_forward(x3, w1, w2, spatial_tile=128))
    assert jnp.allclose(out3, reference_se(x3, w1, w2), atol=1e-5, rtol=1e-5), \
        "mismatch (ragged tail)"

    # 4) Tiny feature map (H*W = 64 < 128): padded-to-one-tile path.
    x4 = jax.random.normal(k_x3, (B, C, 8, 8), dtype=jnp.float32)
    out4 = jax.block_until_ready(se_forward(x4, w1, w2))
    assert jnp.allclose(out4, reference_se(x4, w1, w2), atol=1e-5, rtol=1e-5), \
        "mismatch (small map)"

    print("KERNEL_OK")
</pallas_src>

<mosaic_0001>
module attributes {stable_mosaic.version = 11 : i64} {
  func.func @_se_kernel(%arg0: i32, %arg1: i32, %arg2: memref<1x32x256xf32, #tpu.memory_space<vmem>>, %arg3: memref<32x16xf32, #tpu.memory_space<vmem>>, %arg4: memref<16x32xf32, #tpu.memory_space<vmem>>, %arg5: memref<1x1x32xf32, #tpu.memory_space<vmem>>, %arg6: memref<32x128xf32, #tpu.memory_space<vmem>>) attributes {dimension_semantics = [#tpu.dimension_semantics<parallel>, #tpu.dimension_semantics<arbitrary>], iteration_bounds = array<i64: 2, 1>, scalar_prefetch = 0 : i64, scratch_operands = 1 : i64, tpu.core_type = #tpu.core_type<tc>, window_params = [{transform_indices = @transform_0, window_bounds = array<i64: 1, 32, 256>}, {pipeline_mode = #tpu.pipeline_mode<synchronous>, transform_indices = @transform_1, window_bounds = array<i64: 32, 16>}, {pipeline_mode = #tpu.pipeline_mode<synchronous>, transform_indices = @transform_2, window_bounds = array<i64: 16, 32>}, {transform_indices = @transform_3, window_bounds = array<i64: 1, 1, 32>}]} {
    %c0_i32 = arith.constant 0 : i32
    %0 = arith.cmpi eq, %arg1, %c0_i32 : i32
    %1 = arith.extui %0 : i1 to i32
    %c0_i32_0 = arith.constant 0 : i32
    %2 = arith.cmpi ne, %1, %c0_i32_0 : i32
    scf.if %2 {
      %cst = arith.constant 0.000000e+00 : f32
      %22 = vector.broadcast %cst : f32 to vector<32x128xf32>
      %c0_16 = arith.constant 0 : index
      %c0_17 = arith.constant 0 : index
      %23 = vector.load %arg6[%c0_16, %c0_17] : memref<32x128xf32, #tpu.memory_space<vmem>>, vector<32x128xf32>
      tpu.vector_store %arg6[%c0_16, %c0_17], %22 {strides = array<i32>} : memref<32x128xf32, #tpu.memory_space<vmem>>, vector<32x128xf32>,
    } else {
    }
    %c0_i32_1 = arith.constant 0 : i32
    %c128_i32 = arith.constant 128 : i32
    %3 = arith.muli %c0_i32_1, %c128_i32 : i32
    %4 = tpu.assume_multiple %3, 128 : i32
    %c0 = arith.constant 0 : index
    %c0_2 = arith.constant 0 : index
    %5 = arith.index_cast %4 : i32 to index
    %6 = vector.load %arg2[%c0, %c0_2, %5] : memref<1x32x256xf32, #tpu.memory_space<vmem>>, vector<1x32x128xf32>
    %7 = vector.shape_cast %6 : vector<1x32x128xf32> to vector<32x128xf32>
    %c0_3 = arith.constant 0 : index
    %c0_4 = arith.constant 0 : index
    %8 = vector.load %arg6[%c0_3, %c0_4] : memref<32x128xf32, #tpu.memory_space<vmem>>, vector<32x128xf32>
    %9 = arith.addf %8, %7 : vector<32x128xf32>
    %c0_5 = arith.constant 0 : index
    %c0_6 = arith.constant 0 : index
    %10 = vector.load %arg6[%c0_5, %c0_6] : memref<32x128xf32, #tpu.memory_space<vmem>>, vector<32x128xf32>
    tpu.vector_store %arg6[%c0_5, %c0_6], %9 {strides = array<i32>} : memref<32x128xf32, #tpu.memory_space<vmem>>, vector<32x128xf32>,
    %c1_i32 = arith.constant 1 : i32
    %c128_i32_7 = arith.constant 128 : i32
    %11 = arith.muli %c1_i32, %c128_i32_7 : i32
    %12 = tpu.assume_multiple %11, 128 : i32
    %c0_8 = arith.constant 0 : index
    %c0_9 = arith.constant 0 : index
    %13 = arith.index_cast %12 : i32 to index
    %14 = vector.load %arg2[%c0_8, %c0_9, %13] : memref<1x32x256xf32, #tpu.memory_space<vmem>>, vector<1x32x128xf32>
    %15 = vector.shape_cast %14 : vector<1x32x128xf32> to vector<32x128xf32>
    %c0_10 = arith.constant 0 : index
    %c0_11 = arith.constant 0 : index
    %16 = vector.load %arg6[%c0_10, %c0_11] : memref<32x128xf32, #tpu.memory_space<vmem>>, vector<32x128xf32>
    %17 = arith.addf %16, %15 : vector<32x128xf32>
    %c0_12 = arith.constant 0 : index
    %c0_13 = arith.constant 0 : index
    %18 = vector.load %arg6[%c0_12, %c0_13] : memref<32x128xf32, #tpu.memory_space<vmem>>, vector<32x128xf32>
    tpu.vector_store %arg6[%c0_12, %c0_13], %17 {strides = array<i32>} : memref<32x128xf32, #tpu.memory_space<vmem>>, vector<32x128xf32>,
    %c2_i32 = arith.constant 2 : i32
    %c0_i32_14 = arith.constant 0 : i32
    %19 = arith.cmpi eq, %arg1, %c0_i32_14 : i32
    %20 = arith.extui %19 : i1 to i32
    %c0_i32_15 = arith.constant 0 : i32
    %21 = arith.cmpi ne, %20, %c0_i32_15 : i32
    scf.if %21 {
      %cst = arith.constant 3.906250e-03 : f32
      %22 = vector.broadcast %cst : f32 to vector<1x128xf32>
      %c0_16 = arith.constant 0 : index
      %c0_17 = arith.constant 0 : index
      %23 = vector.load %arg6[%c0_16, %c0_17] : memref<32x128xf32, #tpu.memory_space<vmem>>, vector<32x128xf32>
      %cst_18 = arith.constant dense<0.000000e+00> : vector<1x32xf32>
      %24 = tpu.matmul %22, %23, %cst_18 {dimension_numbers = #tpu.dot_dimension_numbers<[1], [1], [0], [0], [0, 0, 1, 0], [], []>} : vector<1x128xf32>, vector<32x128xf32>, vector<1x32xf32> -> vector<1x32xf32>
      %c0_19 = arith.constant 0 : index
      %c0_20 = arith.constant 0 : index
      %25 = vector.load %arg3[%c0_19, %c0_20] : memref<32x16xf32, #tpu.memory_space<vmem>>, vector<32x16xf32>
      %cst_21 = arith.constant dense<0.000000e+00> : vector<1x16xf32>
      %26 = tpu.matmul %24, %25, %cst_21 {dimension_numbers = #tpu.dot_dimension_numbers<[1], [0], [0], [1], [0, 0, 1, 1], [], []>} : vector<1x32xf32>, vector<32x16xf32>, vector<1x16xf32> -> vector<1x16xf32>
      %cst_22 = arith.constant 0.000000e+00 : f32
      %27 = vector.broadcast %cst_22 : f32 to vector<1x16xf32>
      %28 = arith.maximumf %26, %27 : vector<1x16xf32>
      %c0_23 = arith.constant 0 : index
      %c0_24 = arith.constant 0 : index
      %29 = vector.load %arg4[%c0_23, %c0_24] : memref<16x32xf32, #tpu.memory_space<vmem>>, vector<16x32xf32>
      %cst_25 = arith.constant dense<0.000000e+00> : vector<1x32xf32>
      %30 = tpu.matmul %28, %29, %cst_25 {dimension_numbers = #tpu.dot_dimension_numbers<[1], [0], [0], [1], [0, 0, 1, 1], [], []>} : vector<1x16xf32>, vector<16x32xf32>, vector<1x32xf32> -> vector<1x32xf32>
      %31 = arith.negf %30 : vector<1x32xf32>
      %32 = math.exp %31 : vector<1x32xf32>
      %cst_26 = arith.constant 1.000000e+00 : f32
      %33 = vector.broadcast %cst_26 : f32 to vector<1x32xf32>
      %34 = arith.addf %33, %32 : vector<1x32xf32>
      %35 = arith.divf %33, %34 : vector<1x32xf32>
      %c0_27 = arith.constant 0 : index
      %c0_28 = arith.constant 0 : index
      %c0_29 = arith.constant 0 : index
      %36 = vector.load %arg5[%c0_27, %c0_28, %c0_29] : memref<1x1x32xf32, #tpu.memory_space<vmem>>, vector<1x1x32xf32>
      %37 = vector.shape_cast %36 : vector<1x1x32xf32> to vector<1x32xf32>
      %38 = vector.shape_cast %35 : vector<1x32xf32> to vector<1x1x32xf32>
      tpu.vector_store %arg5[%c0_27, %c0_28, %c0_29], %38 {strides = array<i32>} : memref<1x1x32xf32, #tpu.memory_space<vmem>>, vector<1x1x32xf32>,
    } else {
    }
    return
  }
  func.func @transform_0(%arg0: i32, %arg1: i32) -> (i32, i32, i32) {
    %c0_i32 = arith.constant 0 : i32
    %c0_i32_0 = arith.constant 0 : i32
    return %arg0, %c0_i32, %arg1 : i32, i32, i32
  }
  func.func @transform_1(%arg0: i32, %arg1: i32) -> (i32, i32) {
    %c0_i32 = arith.constant 0 : i32
    %c0_i32_0 = arith.constant 0 : i32
    %c0_i32_1 = arith.constant 0 : i32
    return %c0_i32, %c0_i32_0 : i32, i32
  }
  func.func @transform_2(%arg0: i32, %arg1: i32) -> (i32, i32) {
    %c0_i32 = arith.constant 0 : i32
    %c0_i32_0 = arith.constant 0 : i32
    %c0_i32_1 = arith.constant 0 : i32
    return %c0_i32, %c0_i32_0 : i32, i32
  }
  func.func @transform_3(%arg0: i32, %arg1: i32) -> (i32, i32, i32) {
    %c0_i32 = arith.constant 0 : i32
    %c0_i32_0 = arith.constant 0 : i32
    %c0_i32_1 = arith.constant 0 : i32
    return %arg0, %c0_i32, %c0_i32_0 : i32, i32, i32
  }
}

</mosaic_0001>

<llo_original>
// kernel: tpu_custom_call.1
$region0: #{tpu_custom_call.1}
  #allocation0 [shape = 'u32[]', space=smem, size = 0x4, offset = 0x4, fixed_abs, tag = 'smem constant byte address 0x4 - core index']
  #allocation1 [shape = 'u32[72,128]{1,0:T(1,128)}', space=vmem, size = 0x9000, scoped, tag = 'internal scratch']
  #allocation2 [shape = 'f32[32,128]{1,0:T(8,128)}', space=vmem, size = 0x4000, scoped, tag = 'scratch operand']
  %s0 = inlined_call_operand.hbm [shape: f32[2,32,256], index: 0, kind: input, shape index: {}]
  %s1 = inlined_call_operand.vmem [shape: f32[32,16], index: 1, kind: input, shape index: {}]
  %s2 = inlined_call_operand.vmem [shape: f32[16,32], index: 2, kind: input, shape index: {}]
  %s3 = inlined_call_operand.hbm [shape: f32[2,1,32], index: 3, kind: output, shape index: {}]
  %s4 = sld [smem:[#allocation0]]
  $region57: #{tpu_custom_call.1} parent=0
    _
  %s6 = ssub.s32 1, %s4
  %s7 = scalar_select 0, %s6, %s4
  $region1: #{tpu_custom_call.1} parent=0
    #allocation3 [shape = 'u8[65536]{0}', space=vmem, size = 0x10000, scoped, tag = 'input window, operand 0']
    #allocation4 [shape = 's32[2]{0}', space=sflag, size = 0x8, scoped, tag = 'scoped memory for tpu_custom_call.1']
    #allocation5 [shape = 's32[2]{0}', space=sflag, size = 0x8, scoped, tag = 'scoped memory for tpu_custom_call.1']
    #allocation6 [shape = 'u8[1024]{0}', space=vmem, size = 0x400, scoped, tag = 'output window, operand 0']
    %8 = vsyncpa [#allocation4], 0
    %s9 = scalar_lea.sflag [#allocation4], 1
    %10 = vsyncpa %s9, 0
    %11 = vsyncpa [#allocation5], 0
    %s12 = scalar_lea.sflag [#allocation5], 1
    %13 = vsyncpa %s12, 0
    loop: start=0, step=1, limit=4
    $region2: #{tpu_custom_call.1} parent=1 // loop_pre_header
      _
    $region3: #{tpu_custom_call.1} parent=1 // loop_header
      %s15 = sphi 0, %s19
      %p16 = scmp.ge.s32.totalorder %s15, 4
      %s22 = sphi 0, %s34
      %s23 = sphi 0, %s30
      %s24 = sphi 0, %s22
      %s25 = sphi 0, %s23
      %s26 = sphi 0, %s24
      %s27 = sphi 0, %s25
      %s39 = sphi 0, %s41
      %s42 = sphi 0, %s39
      %s43 = sphi 0, %s42
      %s59 = sphi 0, %s43
      %s63 = sphi 0, %s63
      %s65 = sphi 0, %s63
      %s66 = sphi 0, %s65
      %s80 = sphi 0, %s66
      %s84 = sphi 0, %s84
      %s86 = sphi 0, %s84
      %s87 = sphi 0, %s86
      %s101 = sphi 0, %s87
      %s107 = sphi 0, %s109
      %s110 = sphi 0, %s107
      %s111 = sphi 0, %s110
      %s127 = sphi 0, %s111
    $region4: #{tpu_custom_call.1} parent=1 // loop_header_branch
      %18 = sbr.rel (%p16) target = $region8
    $region5: #{tpu_custom_call.1} parent=1 // loop_body
      %s20 = ssub.s32 %s15, 1
      %s21 = ssub.s32 %s15, 2
      %s28 = sadd.s32 1, %s23
      %p29 = scmp.ge.s32.totalorder %s28, 1
      %s30 = scalar_select %p29, 0, %s28
      %s31 = sadd.s32 1, %s22
      %s32 = scalar_select %p29, %s31, %s22
      %p33 = scmp.ge.s32.totalorder %s32, 2
      %s34 = scalar_select %p33, 0, %s32
      %s35 = ssub.s32 %s22, %s34
      %s36 = ssub.s32 %s23, %s30
      %s37 = sor.u32 %s35, %s36
      %p38 = scmp.eq.s32.totalorder %s37, 0
      %s40 = sadd.s32 %s39, 1
      %s41 = scalar_select %p38, %s39, %s40
      %p44 = pneg %p38
      %p45 = scmp.eq.s32.totalorder %s15, 1
      %p46 = por %p44, %p45
      %p47 = scmp.ne.s32.totalorder %s39, %s42
      %p48 = scmp.eq.s32.totalorder %s15, 0
      %p49 = por %p47, %p48
      %p50 = scmp.ne.s32.totalorder %s39, %s42
      %p51 = scmp.eq.s32.totalorder %s20, 1
      %p52 = por %p50, %p51
      %p53 = scmp.ne.s32.totalorder %s42, %s43
      %p54 = scmp.eq.s32.totalorder %s20, 0
      %p55 = por %p53, %p54
      %p56 = scmp.ne.s32.totalorder %s42, %s43
      %p57 = scmp.eq.s32.totalorder %s21, 1
      %p58 = por %p56, %p57
      %p60 = scmp.ne.s32.totalorder %s43, %s59
      %p61 = scmp.eq.s32.totalorder %s21, 0
      %p62 = por %p60, %p61
      %s64 = sadd.s32 %s63, 1
      %p67 = scmp.eq.s32.totalorder %s15, 1
      %p68 = scmp.ne.s32.totalorder %s63, %s65
      %p69 = scmp.eq.s32.totalorder %s15, 0
      %p70 = por %p68, %p69
      %p71 = scmp.ne.s32.totalorder %s63, %s65
      %p72 = scmp.eq.s32.totalorder %s20, 1
      %p73 = por %p71, %p72
      %p74 = scmp.ne.s32.totalorder %s65, %s66
      %p75 = scmp.eq.s32.totalorder %s20, 0
      %p76 = por %p74, %p75
      %p77 = scmp.ne.s32.totalorder %s65, %s66
      %p78 = scmp.eq.s32.totalorder %s21, 1
      %p79 = por %p77, %p78
      %p81 = scmp.ne.s32.totalorder %s66, %s80
      %p82 = scmp.eq.s32.totalorder %s21, 0
      %p83 = por %p81, %p82
      %s85 = sadd.s32 %s84, 1
      %p88 = scmp.eq.s32.totalorder %s15, 1
      %p89 = scmp.ne.s32.totalorder %s84, %s86
      %p90 = scmp.eq.s32.totalorder %s15, 0
      %p91 = por %p89, %p90
      %p92 = scmp.ne.s32.totalorder %s84, %s86
      %p93 = scmp.eq.s32.totalorder %s20, 1
      %p94 = por %p92, %p93
      %p95 = scmp.ne.s32.totalorder %s86, %s87
      %p96 = scmp.eq.s32.totalorder %s20, 0
      %p97 = por %p95, %p96
      %p98 = scmp.ne.s32.totalorder %s86, %s87
      %p99 = scmp.eq.s32.totalorder %s21, 1
      %p100 = por %p98, %p99
      %p102 = scmp.ne.s32.totalorder %s87, %s101
      %p103 = scmp.eq.s32.totalorder %s21, 0
      %p104 = por %p102, %p103
      %s105 = ssub.s32 %s22, %s34
      %p106 = scmp.eq.s32.totalorder %s105, 0
      %s108 = sadd.s32 %s107, 1
      %s109 = scalar_select %p106, %s107, %s108
      %p112 = pneg %p106
      %p113 = scmp.eq.s32.totalorder %s15, 1
      %p114 = por %p112, %p113
      %p115 = scmp.ne.s32.totalorder %s107, %s110
      %p116 = scmp.eq.s32.totalorder %s15, 0
      %p117 = por %p115, %p116
      %p118 = scmp.ne.s32.totalorder %s107, %s110
      %p119 = scmp.eq.s32.totalorder %s20, 1
      %p120 = por %p118, %p119
      %p121 = scmp.ne.s32.totalorder %s110, %s111
      %p122 = scmp.eq.s32.totalorder %s20, 0
      %p123 = por %p121, %p122
      %p124 = scmp.ne.s32.totalorder %s110, %s111
      %p125 = scmp.eq.s32.totalorder %s21, 1
      %p126 = por %p124, %p125
      %p128 = scmp.ne.s32.totalorder %s111, %s127
      %p129 = scmp.eq.s32.totalorder %s21, 0
      %p130 = por %p128, %p129
      %p131 = scmp.le.s32.totalorder 1, %s15
      %p132 = scmp.lt.s32.totalorder %s15, 3
      %p133 = pnand %p131, %p132
      %p134 = pneg %p133
      // Predicated region
      $region9: #{tpu_custom_call.1} parent=5 // pred_check
        _
      $region10: #{tpu_custom_call.1} parent=5 // pred_check_branch
        %136 = sbr.rel (%p133) target = $region12
      $region11: #{tpu_custom_call.1} parent=5 // pred_region
        %s137 = ssub.s32 %s15, 1
        // Predicated region
        $region13: #{tpu_custom_call.1} parent=11 // pred_check
          %p138 = pneg %p76
        $region14: #{tpu_custom_call.1} parent=11 // pred_check_branch
          %140 = sbr.rel (%p138) target = $region16
        $region15: #{tpu_custom_call.1} parent=11 // pred_region
          _
        $region16: #{tpu_custom_call.1} parent=11 // pred_fallthru
          _
        // Predicated region
        $region17: #{tpu_custom_call.1} parent=11 // pred_check
          %p141 = pneg %p97
        $region18: #{tpu_custom_call.1} parent=11 // pred_check_branch
          %143 = sbr.rel (%p141) target = $region20
        $region19: #{tpu_custom_call.1} parent=11 // pred_region
          _
        $region20: #{tpu_custom_call.1} parent=11 // pred_fallthru
          _
      $region12: #{tpu_custom_call.1} parent=5 // pred_fallthru
        _
      %p144 = scmp.lt.s32.totalorder %s15, 2
      // Predicated region
      $region21: #{tpu_custom_call.1} parent=5 // pred_check
        %p145 = pneg %p144
      $region22: #{tpu_custom_call.1} parent=5 // pred_check_branch
        %147 = sbr.rel (%p145) target = $region24
      $region23: #{tpu_custom_call.1} parent=5 // pred_region
        // Predicated region
        $region25: #{tpu_custom_call.1} parent=23 // pred_check
          %p148 = pneg %p49
        $region26: #{tpu_custom_call.1} parent=23 // pred_check_branch
          %150 = sbr.rel (%p148) target = $region28
        $region27: #{tpu_custom_call.1} parent=23 // pred_region
          %s151 = sand.u32 %s39, 1
          %s152 = scalar_lea.sflag [#allocation4], %s151
          %s153 = sand.u32 %s39, 1
          %s154 = smul.addr %s153, 64
          %s155 = scalar_lea.vmem [#allocation3], %s154
          %s156 = smul.u32 2, %s23
          %158 = vsyncadd %s152, 0
          %s159 = smul.addr %s22, 8
          %s160 = sadd.s32 %s156, %s159
          %s161 = smul.addr %s160, 8
          %s162 = scalar_lea.hbm %s0, %s161
          %s163 = sshll.u32 %s162, 4
          %s164 = int_to_ptr.hbm [resolvable:$true] %s163
          %s165 = sshll.u32 %s155, 4
          %s166 = int_to_ptr.vmem [resolvable:$true] %s165
          %171 = dma.hbm_to_vmem [thread:$0]  %s164, 1024, %s166, %s152, 256, 256, 16
        $region28: #{tpu_custom_call.1} parent=23 // pred_fallthru
          _
      $region24: #{tpu_custom_call.1} parent=5 // pred_fallthru
        _
      %p172 = scmp.le.s32.totalorder 1, %s15
      %p173 = scmp.lt.s32.totalorder %s15, 3
      %p174 = pnand %p172, %p173
      %p175 = pneg %p174
      // Predicated region
      $region29: #{tpu_custom_call.1} parent=5 // pred_check
        _
      $region30: #{tpu_custom_call.1} parent=5 // pred_check_branch
        %177 = sbr.rel (%p174) target = $region32
      $region31: #{tpu_custom_call.1} parent=5 // pred_region
        %s178 = ssub.s32 %s15, 1
        %s179 = sand.u32 %s42, 1
        %s180 = scalar_lea.sflag [#allocation4], %s179
        %s181 = sand.u32 %s42, 1
        %s182 = smul.addr %s181, 64
        %s183 = scalar_lea.vmem [#allocation3], %s182
        // Predicated region
        $region33: #{tpu_custom_call.1} parent=31 // pred_check
          %p184 = pneg %p55
        $region34: #{tpu_custom_call.1} parent=31 // pred_check_branch
          %186 = sbr.rel (%p184) target = $region36
        $region35: #{tpu_custom_call.1} parent=31 // pred_region
          %188 = dma.done %s180, 1024
        $region36: #{tpu_custom_call.1} parent=31 // pred_fallthru
          _
        %s189 = sand.u32 %s42, 1
        %s190 = scalar_lea.sflag [#allocation4], %s189
        %s191 = sand.u32 %s42, 1
        %s192 = smul.addr %s191, 64
        %s193 = scalar_lea.vmem [#allocation3], %s192
        %p194 = pneg %p55
        %p195 = pneg %p52
        %p196 = pneg %p76
        %p197 = pneg %p73
        %p198 = pneg %p97
        %p199 = pneg %p94
        %p200 = pneg %p123
        %p201 = pneg %p120
        %s202 = sand.u32 %s110, 1
        %s203 = scalar_lea.sflag [#allocation5], %s202
        %s204 = sand.u32 %s110, 1
        %s205 = scalar_lea.vmem [#allocation6], %s204
        %s206 = smul.u32 2, %s25
        %p207 = scmp.eq.s32.totalorder %s25, 0
        // Predicated region
        $region37: #{tpu_custom_call.1} parent=31 // pred_check
          %p208 = pneg %p207
        $region38: #{tpu_custom_call.1} parent=31 // pred_check_branch
          %210 = sbr.rel (%p208) target = $region40
        $region39: #{tpu_custom_call.1} parent=31 // pred_region
          %211 = vst [vmem:[#allocation2] sm:$0xff] 0.0
          %212 = vst [vmem:[#allocation2 + $0x8] sm:$0xff] 0.0
          %213 = vst [vmem:[#allocation2 + $0x10] sm:$0xff] 0.0
          %214 = vst [vmem:[#allocation2 + $0x18] sm:$0xff] 0.0
        $region40: #{tpu_custom_call.1} parent=31 // pred_fallthru
          _
        %v215 = vld [vmem:[%s183] sm:$0xff]
        %v216 = vld [vmem:[%s183 + $0x10] sm:$0xff]
        %v217 = vld [vmem:[%s183 + $0x20] sm:$0xff]
        %v218 = vld [vmem:[%s183 + $0x30] sm:$0xff]
        %v219 = vld [vmem:[#allocation2] sm:$0xff]
        %v220 = vld [vmem:[#allocation2 + $0x8] sm:$0xff]
        %v221 = vld [vmem:[#allocation2 + $0x10] sm:$0xff]
        %v222 = vld [vmem:[#allocation2 + $0x18] sm:$0xff]
        %v223 = vadd.f32 %v219, %v215
        %v224 = vadd.f32 %v220, %v216
        %v225 = vadd.f32 %v221, %v217
        %v226 = vadd.f32 %v222, %v218
        %227 = vst [vmem:[#allocation2] sm:$0xff] %v223
        %228 = vst [vmem:[#allocation2 + $0x8] sm:$0xff] %v224
        %229 = vst [vmem:[#allocation2 + $0x10] sm:$0xff] %v225
        %230 = vst [vmem:[#allocation2 + $0x18] sm:$0xff] %v226
        %s231 = scalar_lea.vmem %s183, 8 [#allocation3]
        %v232 = vld [vmem:[%s231] sm:$0xff]
        %v233 = vld [vmem:[%s231 + $0x10] sm:$0xff]
        %v234 = vld [vmem:[%s231 + $0x20] sm:$0xff]
        %v235 = vld [vmem:[%s231 + $0x30] sm:$0xff]
        %v236 = vld [vmem:[#allocation2] sm:$0xff]
        %v237 = vld [vmem:[#allocation2 + $0x8] sm:$0xff]
        %v238 = vld [vmem:[#allocation2 + $0x10] sm:$0xff]
        %v239 = vld [vmem:[#allocation2 + $0x18] sm:$0xff]
        %v240 = vadd.f32 %v236, %v232
        %v241 = vadd.f32 %v237, %v233
        %v242 = vadd.f32 %v238, %v234
        %v243 = vadd.f32 %v239, %v235
        %244 = vst [vmem:[#allocation2] sm:$0xff] %v240
        %245 = vst [vmem:[#allocation2 + $0x8] sm:$0xff] %v241
        %246 = vst [vmem:[#allocation2 + $0x10] sm:$0xff] %v242
        %247 = vst [vmem:[#allocation2 + $0x18] sm:$0xff] %v243
        // Predicated region
        $region41: #{tpu_custom_call.1} parent=31 // pred_check
          %p248 = pneg %p207
        $region42: #{tpu_custom_call.1} parent=31 // pred_check_branch
          %250 = sbr.rel (%p248) target = $region44
        $region43: #{tpu_custom_call.1} parent=31 // pred_region
          %v251 = vld [vmem:[#allocation2] sm:$0xff]
          %v252 = vld [vmem:[#allocation2 + $0x8] sm:$0xff]
          %v253 = vld [vmem:[#allocation2 + $0x10] sm:$0xff]
          %v254 = vld [vmem:[#allocation2 + $0x18] sm:$0xff]
          %255 = vmatpush.xpose.msra.mxu0 0.0
          %256 = vmatpush.xpose.msra.mxu0 0.0
          %257 = vmatpush.xpose.msra.mxu0 0.0
          %258 = vmatpush.xpose.msra.mxu0 0.0
          %259 = vmatpush.xpose.msra.mxu0 0.0
          %260 = vmatpush.xpose.msra.mxu0 0.0
          %261 = vmatpush.xpose.msra.mxu0 0.0
          %262 = vmatpush.xpose.msra.mxu0 0.0
          %263 = vmatpush.xpose.msra.mxu0 0.0
          %264 = vmatpush.xpose.msra.mxu0 0.0
          %265 = vmatpush.xpose.msra.mxu0 0.0
          %266 = vmatpush.xpose.msra.mxu0 0.0
          %267 = vmatpush.xpose.msra.mxu0 %v254
          %268 = vmatpush.xpose.msra.mxu0 %v253
          %269 = vmatpush.xpose.msra.mxu0 %v252
          %270 = vmatpush.xpose.msra.mxu0 %v251
          %271 = vmatmul.f32.gmra.mxu0 0.00390625
          %v272 = vpop.f32.mrf.mxu0
          %v273 = vadd.f32 0.0, %v272
          %274 = vdwg.mxu0
          %v275 = vld [vmem:[%s1] sm:$0xff]
          %v276 = vld [vmem:[%s1 + $0x8] sm:$0xff]
          %v277 = vld [vmem:[%s1 + $0x10] sm:$0xff]
          %v278 = vld [vmem:[%s1 + $0x18] sm:$0xff]
          %vm279 = vcmask 261120
          %v281 = vsel %vm279, %v273, 0
          %283 = vmatpush.msra.mxu0 0.0
          %284 = vmatpush.msra.mxu0 0.0
          %285 = vmatpush.msra.mxu0 0.0
          %286 = vmatpush.msra.mxu0 0.0
          %287 = vmatpush.msra.mxu0 0.0
          %288 = vmatpush.msra.mxu0 0.0
          %289 = vmatpush.msra.mxu0 0.0
          %290 = vmatpush.msra.mxu0 0.0
          %291 = vmatpush.msra.mxu0 0.0
          %292 = vmatpush.msra.mxu0 0.0
          %293 = vmatpush.msra.mxu0 0.0
          %294 = vmatpush.msra.mxu0 0.0
          %295 = vmatpush.msra.mxu0 %v278
          %296 = vmatpush.msra.mxu0 %v277
          %297 = vmatpush.msra.mxu0 %v276
          %298 = vmatpush.msra.mxu0 %v275
          %299 = vmatmul.f32.gmra.mxu0 %v281
          %v300 = vpop.f32.mrf.mxu0
          %v301 = vadd.f32 0.0, %v300
          %302 = vdwg.mxu0
          %v303 = vmax.f32 %v301, 0.0
          %v304 = vld [vmem:[%s2] sm:$0xff]
          %v305 = vld [vmem:[%s2 + $0x8] sm:$0xff]
          %vm306 = vcmask 130048
          %v308 = vsel %vm306, %v303, 0
          %310 = vmatpush.msra.mxu0 0.0
          %311 = vmatpush.msra.mxu0 0.0
          %312 = vmatpush.msra.mxu0 0.0
          %313 = vmatpush.msra.mxu0 0.0
          %314 = vmatpush.msra.mxu0 0.0
          %315 = vmatpush.msra.mxu0 0.0
          %316 = vmatpush.msra.mxu0 0.0
          %317 = vmatpush.msra.mxu0 0.0
          %318 = vmatpush.msra.mxu0 0.0
          %319 = vmatpush.msra.mxu0 0.0
          %320 = vmatpush.msra.mxu0 0.0
          %321 = vmatpush.msra.mxu0 0.0
          %322 = vmatpush.msra.mxu0 0.0
          %323 = vmatpush.msra.mxu0 0.0
          %324 = vmatpush.msra.mxu0 %v305
          %325 = vmatpush.msra.mxu0 %v304
          %326 = vmatmul.f32.gmra.mxu0 %v308
          %v327 = vpop.f32.mrf.mxu0
          %v328 = vadd.f32 0.0, %v327
          %329 = vdwg.mxu0
          %v330 = vxor.u32 %v328, 2147483648
          %v331 = vmul.f32 %v330, 1.442695
          %v332 = vpow.pop %v331
          %v333 = vadd.f32 %v332, 1.0
          %v334 = vrcp.pop %v333
          %v335 = vmul.f32 %v333, %v334
          %v336 = vsub.f32 1.0, %v335
          %v337 = vmul.f32 %v334, %v336
          %v338 = vadd.f32 %v334, %v337
          %vm339 = vweird.f32 %v333
          %vm340 = vweird.f32 %v334
          %vm341 = vmor %vm339, %vm340
          %v342 = vsel %vm341, %v334, %v338
          %v343 = vand.u32 2147483647, %v333
          %vm344 = vcmp.eq.f32.partialorder %v343, 8.507059e+37
          %v345 = vand.u32 %v333, 2147483648
          %v346 = vor.u32 1.1754944e-38, %v345
          %v347 = vsel %vm344, %v346, %v342
          %v348 = vmul.f32 1.0, %v347
          %vm349 = vcmask 253952
          %350 = vst.msk [vmem:[%s205] sm:$0x1] %vm349, %v348
        $region44: #{tpu_custom_call.1} parent=31 // pred_fallthru
          _
        %s351 = sand.u32 %s110, 1
        %s352 = scalar_lea.sflag [#allocation5], %s351
        %s353 = sand.u32 %s110, 1
        %s354 = scalar_lea.vmem [#allocation6], %s353
        // Predicated region
        $region45: #{tpu_custom_call.1} parent=31 // pred_check
          %p355 = pneg %p120
        $region46: #{tpu_custom_call.1} parent=31 // pred_check_branch
          %357 = sbr.rel (%p355) target = $region48
        $region47: #{tpu_custom_call.1} parent=31 // pred_region
          %359 = vsyncadd %s352, 0
          %s360 = scalar_lea.hbm %s3, %s24
          %s362 = sshll.u32 %s354, 4
          %s363 = int_to_ptr.vmem [resolvable:$true] %s362
          %s364 = sshll.u32 %s360, 4
          %s365 = int_to_ptr.hbm [resolvable:$true] %s364
          %367 = dma.vmem_to_hbm [thread:$0]  %s363, 16, %s365, %s352
        $region48: #{tpu_custom_call.1} parent=31 // pred_fallthru
          _
      $region32: #{tpu_custom_call.1} parent=5 // pred_fallthru
        _
      %p368 = scmp.le.s32.totalorder 2, %s15
      // Predicated region
      $region49: #{tpu_custom_call.1} parent=5 // pred_check
        %p369 = pneg %p368
      $region50: #{tpu_custom_call.1} parent=5 // pred_check_branch
        %371 = sbr.rel (%p369) target = $region52
      $region51: #{tpu_custom_call.1} parent=5 // pred_region
        %s372 = ssub.s32 %s15, 2
        // Predicated region
        $region53: #{tpu_custom_call.1} parent=51 // pred_check
          %p373 = pneg %p126
        $region54: #{tpu_custom_call.1} parent=51 // pred_check_branch
          %375 = sbr.rel (%p373) target = $region56
        $region55: #{tpu_custom_call.1} parent=51 // pred_region
          %s376 = sand.u32 %s111, 1
          %s377 = scalar_lea.sflag [#allocation5], %s376
          %s378 = sand.u32 %s111, 1
          %s379 = scalar_lea.vmem [#allocation6], %s378
          %381 = dma.done %s377, 16
        $region56: #{tpu_custom_call.1} parent=51 // pred_fallthru
          _
      $region52: #{tpu_custom_call.1} parent=5 // pred_fallthru
        _
    $region6: #{tpu_custom_call.1} parent=1 // loop_footer
      %s19 = sadd.s32 1, %s15
    $region7: #{tpu_custom_call.1} parent=1 // loop_footer_branch
      %14 = sbr.rel target = $region3
    $region8: #{tpu_custom_call.1} parent=1 // loop_exit
      _
    %382 = vsyncpa [#allocation4], 1
    %s383 = scalar_lea.sflag [#allocation4], 1
    %384 = vsyncpa %s383, 1
    %385 = vsyncpa [#allocation5], 1
    %s386 = scalar_lea.sflag [#allocation5], 1
    %387 = vsyncpa %s386, 1

</llo_original>
